<compile_context>
chip_gen: v6e
topology: v6e:2x2x1
jax: 0.10.0
libtpu: 0.0.40
codegen_flags: <defaults>
</compile_context>

<pallas_src>
import functools
import math

import jax
import jax.numpy as jnp
from jax.experimental import pallas as pl
from jax.experimental.pallas import tpu as pltpu

LOG_SQRT_2PI = 0.5 * math.log(2.0 * math.pi)


def _ru8(n):
    return -(-n // 8) * 8


def _param_layout(state_dim, hidden, action_dim):
    """Row offsets of each parameter inside the packed slab (8-row aligned)."""
    o_w1 = 0
    o_b1 = o_w1 + _ru8(state_dim)
    o_w2 = o_b1 + 8
    o_b2 = o_w2 + _ru8(hidden)
    o_wh = o_b2 + 8
    o_bh = o_wh + _ru8(hidden)
    rows = o_bh + 8
    width = max(hidden, 2 * action_dim)
    return (o_w1, o_b1, o_w2, o_b2, o_wh, o_bh), rows, width


def pack_params(params):
    """Build the single parameter slab ONCE (outside the per-call path)."""
    w1 = params["w1"]
    state_dim, hidden = w1.shape
    action_dim = params["wmu"].shape[1]
    offs, rows, width = _param_layout(state_dim, hidden, action_dim)

    # fused mu|sigma head (one MXU pass in-kernel)
    wh = jnp.concatenate([params["wmu"], params["wsig"]], axis=1)   # (H, 2A)
    bh = jnp.concatenate([params["bmu"], params["bsig"]], axis=1)   # (1, 2A)

    slab = jnp.zeros((rows, width), jnp.float32)

    def put(s, off, arr):
        r, c = arr.shape
        return s.at[off:off + r, 0:c].set(arr.astype(jnp.float32))

    slab = put(slab, offs[0], w1)
    slab = put(slab, offs[1], params["b1"])
    slab = put(slab, offs[2], params["w2"])
    slab = put(slab, offs[3], params["b2"])
    slab = put(slab, offs[4], wh)
    slab = put(slab, offs[5], bh)
    return slab


def actor_kernel(state_ref, eps_ref, p_ref, out_ref, *,
                 state_dim, hidden, action_dim, action_range, offs):
    S, H, A = state_dim, hidden, action_dim
    o_w1, o_b1, o_w2, o_b2, o_wh, o_bh = offs

    x = state_ref[...]                                   # (B, S)
    eps = eps_ref[...]                                   # (B, A)

    # Static sub-views of the single packed parameter slab (8-row aligned).
    w1 = p_ref[o_w1:o_w1 + S, 0:H]
    b1 = p_ref[o_b1:o_b1 + 1, 0:H]
    w2 = p_ref[o_w2:o_w2 + H, 0:H]
    b2 = p_ref[o_b2:o_b2 + 1, 0:H]
    wh = p_ref[o_wh:o_wh + H, 0:2 * A]
    bh = p_ref[o_bh:o_bh + 1, 0:2 * A]

    # fc1 + relu, fc2 + relu
    h1 = jnp.maximum(jnp.dot(x, w1, preferred_element_type=jnp.float32) + b1, 0.0)
    h2 = jnp.maximum(jnp.dot(h1, w2, preferred_element_type=jnp.float32) + b2, 0.0)

    # fused mu|sigma head: one MXU pass for both pre-activations
    heads = jnp.dot(h2, wh, preferred_element_type=jnp.float32) + bh   # (B, 2A)

    # Transcendentals on the full tile (EUP slot otherwise idle); only the
    # sigma half needs a lane-offset slice afterwards.
    tanh_all = jnp.tanh(heads)
    sp_all = jnp.logaddexp(0.0, heads)                   # softplus

    mu = tanh_all[:, 0:A] * action_range
    sigma = sp_all[:, A:2 * A]
    log_sigma = jnp.log(sigma)

    # Normal(mu, sigma): reparameterized sample; z = (act - mu)/sigma == eps.
    act = mu + sigma * eps
    logp = -0.5 * eps * eps - log_sigma - LOG_SQRT_2PI   # Normal.log_prob
    ent = 0.5 + LOG_SQRT_2PI + log_sigma                 # Normal.entropy

    # Three direct partial stores into the single lane-contiguous output slab
    # (no in-kernel concat / lane-merge temporaries).
    out_ref[:, pl.ds(0, A)] = act
    out_ref[:, pl.ds(A, A)] = logp
    out_ref[:, pl.ds(2 * A, A)] = ent


def actor_forward(state, eps, packed_params, *, hidden, action_dim, action_range):
    """Run the Actor forward pass in a single Pallas kernel.

    Returns (act, log_prob, entropy), each of shape (B, action_dim).
    """
    B, S = state.shape
    H, A = hidden, action_dim
    offs, rows, width = _param_layout(S, H, A)
    assert packed_params.shape == (rows, width)

    kernel = functools.partial(
        actor_kernel, state_dim=S, hidden=H, action_dim=A,
        action_range=float(action_range), offs=offs)

    vmem = pl.BlockSpec(memory_space=pltpu.MemorySpace.VMEM)

    flops = 2 * B * (S * H + H * H + H * 2 * A) + 16 * B * A
    bytes_accessed = 4 * (B * S + B * A + rows * width + B * 3 * A)

    packed_out = pl.pallas_call(
        kernel,
        out_shape=jax.ShapeDtypeStruct((B, 3 * A), jnp.float32),
        # Tiny tensors: whole arrays live in VMEM, one grid point, no tiling.
        in_specs=[vmem, vmem, vmem],
        out_specs=vmem,
        cost_estimate=pl.CostEstimate(
            flops=flops, transcendentals=6 * B * A,
            bytes_accessed=bytes_accessed),
    )(state, eps, packed_params)

    act = packed_out[:, :A]
    log_prob = packed_out[:, A:2 * A]
    entropy = packed_out[:, 2 * A:]
    return act, log_prob, entropy


def init_params(key, state_dim, action_dim, hidden=16):
    """Deterministic synthetic parameters (PyTorch-like uniform fan-in init)."""
    ks = jax.random.split(key, 8)

    def linear(kw, kb, fan_in, fan_out):
        bound = 1.0 / math.sqrt(fan_in)
        w = jax.random.uniform(kw, (fan_in, fan_out), jnp.float32, -bound, bound)
        b = jax.random.uniform(kb, (1, fan_out), jnp.float32, -bound, bound)
        return w, b

    w1, b1 = linear(ks[0], ks[1], state_dim, hidden)
    w2, b2 = linear(ks[2], ks[3], hidden, hidden)
    wmu, bmu = linear(ks[4], ks[5], hidden, action_dim)
    wsig, bsig = linear(ks[6], ks[7], hidden, action_dim)
    return dict(w1=w1, b1=b1, w2=w2, b2=b2,
                wmu=wmu, bmu=bmu, wsig=wsig, bsig=bsig)


if __name__ == "__main__":
    B, STATE_DIM, ACTION_DIM, HIDDEN = 8, 8, 4, 16
    ACTION_RANGE = 2.0

    root = jax.random.PRNGKey(0)
    k_state, k_eps, k_params = jax.random.split(root, 3)

    state = jax.random.normal(k_state, (B, STATE_DIM), jnp.float32)
    # eps for the reparameterized rsample() (standard normal noise)
    eps = jax.random.normal(k_eps, (B, ACTION_DIM), jnp.float32)
    params = init_params(k_params, STATE_DIM, ACTION_DIM, HIDDEN)

    # Pack all parameters into ONE slab, once (hoisted out of the call path).
    packed_params = jax.block_until_ready(pack_params(params))

    act, log_prob, entropy = actor_forward(
        state, eps, packed_params,
        hidden=HIDDEN, action_dim=ACTION_DIM, action_range=ACTION_RANGE)
    jax.block_until_ready((act, log_prob, entropy))

    # Sanity check against a pure-JAX reference of the original module math.
    def ref(state, eps, p):
        h1 = jnp.maximum(state @ p["w1"] + p["b1"], 0.0)
        h2 = jnp.maximum(h1 @ p["w2"] + p["b2"], 0.0)
        mu = jnp.tanh(h2 @ p["wmu"] + p["bmu"]) * ACTION_RANGE
        sigma = jnp.logaddexp(0.0, h2 @ p["wsig"] + p["bsig"])
        a = mu + sigma * eps
        lp = -0.5 * ((a - mu) / sigma) ** 2 - jnp.log(sigma) - LOG_SQRT_2PI
        en = 0.5 + LOG_SQRT_2PI + jnp.log(sigma)
        return a, lp, en

    ra, rlp, ren = ref(state, eps, params)
    assert jnp.allclose(act, ra, atol=1e-5, rtol=1e-5)
    assert jnp.allclose(log_prob, rlp, atol=1e-5, rtol=1e-5)
    assert jnp.allclose(entropy, ren, atol=1e-5, rtol=1e-5)

    print("KERNEL_OK")
</pallas_src>

<mosaic_0001>
module attributes {stable_mosaic.version = 11 : i64} {
  func.func @actor_kernel(%arg0: memref<8x8xf32, #tpu.memory_space<vmem>>, %arg1: memref<8x4xf32, #tpu.memory_space<vmem>>, %arg2: memref<64x16xf32, #tpu.memory_space<vmem>>, %arg3: memref<8x12xf32, #tpu.memory_space<vmem>>) attributes {dimension_semantics = [], scalar_prefetch = 0 : i64, scratch_operands = 0 : i64, tpu.core_type = #tpu.core_type<tc>} {
    %c0 = arith.constant 0 : index
    %c0_0 = arith.constant 0 : index
    %0 = vector.load %arg0[%c0, %c0_0] : memref<8x8xf32, #tpu.memory_space<vmem>>, vector<8x8xf32>
    %c0_1 = arith.constant 0 : index
    %c0_2 = arith.constant 0 : index
    %1 = vector.load %arg1[%c0_1, %c0_2] : memref<8x4xf32, #tpu.memory_space<vmem>>, vector<8x4xf32>
    %c0_3 = arith.constant 0 : index
    %c0_4 = arith.constant 0 : index
    %2 = vector.load %arg2[%c0_3, %c0_4] : memref<64x16xf32, #tpu.memory_space<vmem>>, vector<8x16xf32>
    %c8 = arith.constant 8 : index
    %c0_5 = arith.constant 0 : index
    %3 = vector.load %arg2[%c8, %c0_5] : memref<64x16xf32, #tpu.memory_space<vmem>>, vector<1x16xf32>
    %c16 = arith.constant 16 : index
    %c0_6 = arith.constant 0 : index
    %4 = vector.load %arg2[%c16, %c0_6] : memref<64x16xf32, #tpu.memory_space<vmem>>, vector<16x16xf32>
    %c32 = arith.constant 32 : index
    %c0_7 = arith.constant 0 : index
    %5 = vector.load %arg2[%c32, %c0_7] : memref<64x16xf32, #tpu.memory_space<vmem>>, vector<1x16xf32>
    %c40 = arith.constant 40 : index
    %c0_8 = arith.constant 0 : index
    %6 = vector.load %arg2[%c40, %c0_8] : memref<64x16xf32, #tpu.memory_space<vmem>>, vector<16x8xf32>
    %c56 = arith.constant 56 : index
    %c0_9 = arith.constant 0 : index
    %7 = vector.load %arg2[%c56, %c0_9] : memref<64x16xf32, #tpu.memory_space<vmem>>, vector<1x8xf32>
    %cst = arith.constant dense<0.000000e+00> : vector<8x16xf32>
    %8 = tpu.matmul %0, %2, %cst {dimension_numbers = #tpu.dot_dimension_numbers<[1], [0], [0], [1], [0, 0, 1, 1], [], []>} : vector<8x8xf32>, vector<8x16xf32>, vector<8x16xf32> -> vector<8x16xf32>
    %9 = vector.broadcast %3 : vector<1x16xf32> to vector<8x16xf32>
    %10 = arith.addf %8, %9 : vector<8x16xf32>
    %cst_10 = arith.constant 0.000000e+00 : f32
    %11 = vector.broadcast %cst_10 : f32 to vector<8x16xf32>
    %12 = arith.maximumf %10, %11 : vector<8x16xf32>
    %cst_11 = arith.constant dense<0.000000e+00> : vector<8x16xf32>
    %13 = tpu.matmul %12, %4, %cst_11 {dimension_numbers = #tpu.dot_dimension_numbers<[1], [0], [0], [1], [0, 0, 1, 1], [], []>} : vector<8x16xf32>, vector<16x16xf32>, vector<8x16xf32> -> vector<8x16xf32>
    %14 = vector.broadcast %5 : vector<1x16xf32> to vector<8x16xf32>
    %15 = arith.addf %13, %14 : vector<8x16xf32>
    %cst_12 = arith.constant 0.000000e+00 : f32
    %16 = vector.broadcast %cst_12 : f32 to vector<8x16xf32>
    %17 = arith.maximumf %15, %16 : vector<8x16xf32>
    %cst_13 = arith.constant dense<0.000000e+00> : vector<8x8xf32>
    %18 = tpu.matmul %17, %6, %cst_13 {dimension_numbers = #tpu.dot_dimension_numbers<[1], [0], [0], [1], [0, 0, 1, 1], [], []>} : vector<8x16xf32>, vector<16x8xf32>, vector<8x8xf32> -> vector<8x8xf32>
    %19 = vector.broadcast %7 : vector<1x8xf32> to vector<8x8xf32>
    %20 = arith.addf %18, %19 : vector<8x8xf32>
    %21 = math.tanh %20 : vector<8x8xf32>
    %cst_14 = arith.constant 0.000000e+00 : f32
    %22 = vector.broadcast %cst_14 : f32 to vector<8x8xf32>
    %23 = arith.maximumf %22, %20 : vector<8x8xf32>
    %24 = vector.broadcast %cst_14 : f32 to vector<8x8xf32>
    %25 = arith.subf %24, %20 : vector<8x8xf32>
    %26 = arith.cmpf one, %25, %25 : vector<8x8xf32>
    %27 = vector.broadcast %cst_14 : f32 to vector<8x8xf32>
    %28 = arith.addf %27, %20 : vector<8x8xf32>
    %29 = math.absf %25 : vector<8x8xf32>
    %cst_15 = arith.constant 0.000000e+00 : f32
    %30 = vector.broadcast %cst_15 : f32 to vector<8x8xf32>
    %31 = arith.subf %30, %29 : vector<8x8xf32>
    %32 = math.exp %31 : vector<8x8xf32>
    %33 = math.log1p %32 : vector<8x8xf32>
    %34 = arith.addf %23, %33 : vector<8x8xf32>
    %35 = arith.select %26, %28, %34 : vector<8x8xi1>, vector<8x8xf32>
    %36 = vector.extract_strided_slice %21 {offsets = [0, 0], sizes = [8, 4], strides = [1, 1]} : vector<8x8xf32> to vector<8x4xf32>
    %cst_16 = arith.constant 2.000000e+00 : f32
    %37 = vector.broadcast %cst_16 : f32 to vector<8x4xf32>
    %38 = arith.mulf %36, %37 : vector<8x4xf32>
    %39 = vector.extract_strided_slice %35 {offsets = [0, 4], sizes = [8, 4], strides = [1, 1]} : vector<8x8xf32> to vector<8x4xf32>
    %40 = math.log %39 : vector<8x4xf32>
    %41 = arith.mulf %39, %1 : vector<8x4xf32>
    %42 = arith.addf %38, %41 : vector<8x4xf32>
    %cst_17 = arith.constant -5.000000e-01 : f32
    %43 = vector.broadcast %cst_17 : f32 to vector<8x4xf32>
    %44 = arith.mulf %43, %1 : vector<8x4xf32>
    %45 = arith.mulf %44, %1 : vector<8x4xf32>
    %46 = arith.subf %45, %40 : vector<8x4xf32>
    %cst_18 = arith.constant 0.918938517 : f32
    %47 = vector.broadcast %cst_18 : f32 to vector<8x4xf32>
    %48 = arith.subf %46, %47 : vector<8x4xf32>
    %cst_19 = arith.constant 1.41893852 : f32
    %49 = vector.broadcast %cst_19 : f32 to vector<8x4xf32>
    %50 = arith.addf %49, %40 : vector<8x4xf32>
    %c0_20 = arith.constant 0 : index
    %c0_21 = arith.constant 0 : index
    %51 = vector.load %arg3[%c0_20, %c0_21] : memref<8x12xf32, #tpu.memory_space<vmem>>, vector<8x4xf32>
    tpu.vector_store %arg3[%c0_20, %c0_21], %42 {strides = array<i32>} : memref<8x12xf32, #tpu.memory_space<vmem>>, vector<8x4xf32>,
    %c0_22 = arith.constant 0 : index
    %c4 = arith.constant 4 : index
    %52 = vector.load %arg3[%c0_22, %c4] : memref<8x12xf32, #tpu.memory_space<vmem>>, vector<8x4xf32>
    tpu.vector_store %arg3[%c0_22, %c4], %48 {strides = array<i32>} : memref<8x12xf32, #tpu.memory_space<vmem>>, vector<8x4xf32>,
    %c0_23 = arith.constant 0 : index
    %c8_24 = arith.constant 8 : index
    %53 = vector.load %arg3[%c0_23, %c8_24] : memref<8x12xf32, #tpu.memory_space<vmem>>, vector<8x4xf32>
    tpu.vector_store %arg3[%c0_23, %c8_24], %50 {strides = array<i32>} : memref<8x12xf32, #tpu.memory_space<vmem>>, vector<8x4xf32>,
    return
  }
}

</mosaic_0001>

<llo_original>
// kernel: tpu_custom_call.1
$region0: #{tpu_custom_call.1}
  #allocation0 [shape = 'u32[]', space=smem, size = 0x4, offset = 0x4, fixed_abs, tag = 'smem constant byte address 0x4 - core index']
  #allocation1 [shape = 'u32[144,128]{1,0:T(1,128)}', space=vmem, size = 0x12000, scoped, tag = 'internal scratch']
  %s0 = inlined_call_operand.vmem [shape: f32[8,8], index: 0, kind: input, shape index: {}]
  %s1 = inlined_call_operand.vmem [shape: f32[8,4], index: 1, kind: input, shape index: {}]
  %s2 = inlined_call_operand.vmem [shape: f32[64,16], index: 2, kind: input, shape index: {}]
  %s3 = inlined_call_operand.hbm [shape: f32[8,12], index: 3, kind: output, shape index: {}]
  %s4 = sld [smem:[#allocation0]]
  $region22: #{tpu_custom_call.1} parent=0
    _
  %s6 = ssub.s32 1, %s4
  %s7 = scalar_select 0, %s6, %s4
  $region1: #{tpu_custom_call.1} parent=0
    #allocation2 [shape = 'u8[4096]{0}', space=vmem, size = 0x1000, scoped, tag = 'output window, operand 0, single buffered']
    #allocation3 [shape = 's32[1]{0}', space=sflag, size = 0x4, scoped, tag = 'scoped memory for tpu_custom_call.1']
    %8 = vsyncpa [#allocation3], 0
    // Predicated region
    $region2: #{tpu_custom_call.1} parent=1 // pred_check
      _
    $region3: #{tpu_custom_call.1} parent=1 // pred_check_branch
      %10 = sbr.rel (0) target = $region5
    $region4: #{tpu_custom_call.1} parent=1 // pred_region
      _
    $region5: #{tpu_custom_call.1} parent=1 // pred_fallthru
      _
    // Predicated region
    $region6: #{tpu_custom_call.1} parent=1 // pred_check
      _
    $region7: #{tpu_custom_call.1} parent=1 // pred_check_branch
      %12 = sbr.rel (0) target = $region9
    $region8: #{tpu_custom_call.1} parent=1 // pred_region
      _
    $region9: #{tpu_custom_call.1} parent=1 // pred_fallthru
      _
    // Predicated region
    $region10: #{tpu_custom_call.1} parent=1 // pred_check
      _
    $region11: #{tpu_custom_call.1} parent=1 // pred_check_branch
      %14 = sbr.rel (0) target = $region13
    $region12: #{tpu_custom_call.1} parent=1 // pred_region
      _
    $region13: #{tpu_custom_call.1} parent=1 // pred_fallthru
      _
    %v15 = vld [vmem:[%s0] sm:$0xff]
    %v16 = vld [vmem:[%s1] sm:$0xff]
    %v17 = vld [vmem:[%s2] sm:$0xff]
    %v18 = vld [vmem:[%s2 + $0x8] sm:$0x1]
    %v19 = vld [vmem:[%s2 + $0x10] sm:$0xff]
    %v20 = vld [vmem:[%s2 + $0x18] sm:$0xff]
    %v21 = vld [vmem:[%s2 + $0x20] sm:$0x1]
    %v22 = vld [vmem:[%s2 + $0x28] sm:$0xff]
    %v23 = vld [vmem:[%s2 + $0x30] sm:$0xff]
    %v24 = vld [vmem:[%s2 + $0x38] sm:$0x1]
    %v25 = vlaneseq
    %v26 = vshrl.u32 %v25, 7
    %v27 = vsub.s32 0, %v26
    %v28 = vrot.slane %v18, %v27
    %vm29 = vcmask 64512
    %v31 = vsel %vm29, %v15, 0
    %33 = vmatprep.subr.mxu0 0.0
    %34 = vmatpush1.msra.mxu0 0.0
    %35 = vmatprep.subr.mxu0 0.0
    %36 = vmatpush1.msra.mxu0 0.0
    %37 = vmatprep.subr.mxu0 0.0
    %38 = vmatpush1.msra.mxu0 0.0
    %39 = vmatprep.subr.mxu0 0.0
    %40 = vmatpush1.msra.mxu0 0.0
    %41 = vmatprep.subr.mxu0 0.0
    %42 = vmatpush1.msra.mxu0 0.0
    %43 = vmatprep.subr.mxu0 0.0
    %44 = vmatpush1.msra.mxu0 0.0
    %45 = vmatprep.subr.mxu0 0.0
    %46 = vmatpush1.msra.mxu0 0.0
    %47 = vmatprep.subr.mxu0 0.0
    %48 = vmatpush1.msra.mxu0 0.0
    %49 = vmatprep.subr.mxu0 0.0
    %50 = vmatpush1.msra.mxu0 0.0
    %51 = vmatprep.subr.mxu0 0.0
    %52 = vmatpush1.msra.mxu0 0.0
    %53 = vmatprep.subr.mxu0 0.0
    %54 = vmatpush1.msra.mxu0 0.0
    %55 = vmatprep.subr.mxu0 0.0
    %56 = vmatpush1.msra.mxu0 0.0
    %57 = vmatprep.subr.mxu0 0.0
    %58 = vmatpush1.msra.mxu0 0.0
    %59 = vmatprep.subr.mxu0 0.0
    %60 = vmatpush1.msra.mxu0 0.0
    %61 = vmatprep.subr.mxu0 0.0
    %62 = vmatpush1.msra.mxu0 0.0
    %63 = vmatprep.subr.mxu0 0.0
    %64 = vmatpush1.msra.mxu0 %v17
    %65 = vmatprep.subr.mxu0 0.0
    %66 = vmatpush2.msra.mxu0 0.0
    %67 = vmatprep.subr.mxu0 0.0
    %68 = vmatpush2.msra.mxu0 0.0
    %69 = vmatprep.subr.mxu0 0.0
    %70 = vmatpush2.msra.mxu0 0.0
    %71 = vmatprep.subr.mxu0 0.0
    %72 = vmatpush2.msra.mxu0 0.0
    %73 = vmatprep.subr.mxu0 0.0
    %74 = vmatpush2.msra.mxu0 0.0
    %75 = vmatprep.subr.mxu0 0.0
    %76 = vmatpush2.msra.mxu0 0.0
    %77 = vmatprep.subr.mxu0 0.0
    %78 = vmatpush2.msra.mxu0 0.0
    %79 = vmatprep.subr.mxu0 0.0
    %80 = vmatpush2.msra.mxu0 0.0
    %81 = vmatprep.subr.mxu0 0.0
    %82 = vmatpush2.msra.mxu0 0.0
    %83 = vmatprep.subr.mxu0 0.0
    %84 = vmatpush2.msra.mxu0 0.0
    %85 = vmatprep.subr.mxu0 0.0
    %86 = vmatpush2.msra.mxu0 0.0
    %87 = vmatprep.subr.mxu0 0.0
    %88 = vmatpush2.msra.mxu0 0.0
    %89 = vmatprep.subr.mxu0 0.0
    %90 = vmatpush2.msra.mxu0 0.0
    %91 = vmatprep.subr.mxu0 0.0
    %92 = vmatpush2.msra.mxu0 0.0
    %93 = vmatprep.subr.mxu0 0.0
    %94 = vmatpush2.msra.mxu0 0.0
    %95 = vmatprep.subr.mxu0 0.0
    %96 = vmatpush2.msra.mxu0 0.0
    %97 = vmatprep.mubr.f32.mxu0 0.0
    %98 = vmatmul.mubr.f32.gmra.mxu0 %v31
    %v99 = vpop.f32.mrf.mxu0
    %v100 = vadd.f32 %v28, %v99
    %v101 = vpop.f32.mrf.mxu0
    %102 = vdwg.mxu0
    %v103 = vmax.f32 %v100, 0.0
    %v104 = vlaneseq
    %v105 = vshrl.u32 %v104, 7
    %v106 = vsub.s32 0, %v105
    %v107 = vrot.slane %v21, %v106
    %vm108 = vcmask 130048
    %v110 = vsel %vm108, %v103, 0
    %112 = vmatprep.subr.mxu0 0.0
    %113 = vmatpush1.msra.mxu0 0.0
    %114 = vmatprep.subr.mxu0 0.0
    %115 = vmatpush1.msra.mxu0 0.0
    %116 = vmatprep.subr.mxu0 0.0
    %117 = vmatpush1.msra.mxu0 0.0
    %118 = vmatprep.subr.mxu0 0.0
    %119 = vmatpush1.msra.mxu0 0.0
    %120 = vmatprep.subr.mxu0 0.0
    %121 = vmatpush1.msra.mxu0 0.0
    %122 = vmatprep.subr.mxu0 0.0
    %123 = vmatpush1.msra.mxu0 0.0
    %124 = vmatprep.subr.mxu0 0.0
    %125 = vmatpush1.msra.mxu0 0.0
    %126 = vmatprep.subr.mxu0 0.0
    %127 = vmatpush1.msra.mxu0 0.0
    %128 = vmatprep.subr.mxu0 0.0
    %129 = vmatpush1.msra.mxu0 0.0
    %130 = vmatprep.subr.mxu0 0.0
    %131 = vmatpush1.msra.mxu0 0.0
    %132 = vmatprep.subr.mxu0 0.0
    %133 = vmatpush1.msra.mxu0 0.0
    %134 = vmatprep.subr.mxu0 0.0
    %135 = vmatpush1.msra.mxu0 0.0
    %136 = vmatprep.subr.mxu0 0.0
    %137 = vmatpush1.msra.mxu0 0.0
    %138 = vmatprep.subr.mxu0 0.0
    %139 = vmatpush1.msra.mxu0 0.0
    %140 = vmatprep.subr.mxu0 0.0
    %141 = vmatpush1.msra.mxu0 %v20
    %142 = vmatprep.subr.mxu0 0.0
    %143 = vmatpush1.msra.mxu0 %v19
    %144 = vmatprep.subr.mxu0 0.0
    %145 = vmatpush2.msra.mxu0 0.0
    %146 = vmatprep.subr.mxu0 0.0
    %147 = vmatpush2.msra.mxu0 0.0
    %148 = vmatprep.subr.mxu0 0.0
    %149 = vmatpush2.msra.mxu0 0.0
    %150 = vmatprep.subr.mxu0 0.0
    %151 = vmatpush2.msra.mxu0 0.0
    %152 = vmatprep.subr.mxu0 0.0
    %153 = vmatpush2.msra.mxu0 0.0
    %154 = vmatprep.subr.mxu0 0.0
    %155 = vmatpush2.msra.mxu0 0.0
    %156 = vmatprep.subr.mxu0 0.0
    %157 = vmatpush2.msra.mxu0 0.0
    %158 = vmatprep.subr.mxu0 0.0
    %159 = vmatpush2.msra.mxu0 0.0
    %160 = vmatprep.subr.mxu0 0.0
    %161 = vmatpush2.msra.mxu0 0.0
    %162 = vmatprep.subr.mxu0 0.0
    %163 = vmatpush2.msra.mxu0 0.0
    %164 = vmatprep.subr.mxu0 0.0
    %165 = vmatpush2.msra.mxu0 0.0
    %166 = vmatprep.subr.mxu0 0.0
    %167 = vmatpush2.msra.mxu0 0.0
    %168 = vmatprep.subr.mxu0 0.0
    %169 = vmatpush2.msra.mxu0 0.0
    %170 = vmatprep.subr.mxu0 0.0
    %171 = vmatpush2.msra.mxu0 0.0
    %172 = vmatprep.subr.mxu0 0.0
    %173 = vmatpush2.msra.mxu0 0.0
    %174 = vmatprep.subr.mxu0 0.0
    %175 = vmatpush2.msra.mxu0 0.0
    %176 = vmatprep.mubr.f32.mxu0 0.0
    %177 = vmatmul.mubr.f32.gmra.mxu0 %v110
    %v178 = vpop.f32.mrf.mxu0
    %v179 = vadd.f32 %v107, %v178
    %v180 = vpop.f32.mrf.mxu0
    %181 = vdwg.mxu0
    %v182 = vmax.f32 %v179, 0.0
    %v183 = vlaneseq
    %v184 = vshrl.u32 %v183, 7
    %v185 = vsub.s32 0, %v184
    %v186 = vrot.slane %v24, %v185
    %v188 = vsel %vm108, %v182, 0
    %190 = vmatprep.subr.mxu0 0.0
    %191 = vmatpush1.msra.mxu0 0.0
    %192 = vmatprep.subr.mxu0 0.0
    %193 = vmatpush1.msra.mxu0 0.0
    %194 = vmatprep.subr.mxu0 0.0
    %195 = vmatpush1.msra.mxu0 0.0
    %196 = vmatprep.subr.mxu0 0.0
    %197 = vmatpush1.msra.mxu0 0.0
    %198 = vmatprep.subr.mxu0 0.0
    %199 = vmatpush1.msra.mxu0 0.0
    %200 = vmatprep.subr.mxu0 0.0
    %201 = vmatpush1.msra.mxu0 0.0
    %202 = vmatprep.subr.mxu0 0.0
    %203 = vmatpush1.msra.mxu0 0.0
    %204 = vmatprep.subr.mxu0 0.0
    %205 = vmatpush1.msra.mxu0 0.0
    %206 = vmatprep.subr.mxu0 0.0
    %207 = vmatpush1.msra.mxu0 0.0
    %208 = vmatprep.subr.mxu0 0.0
    %209 = vmatpush1.msra.mxu0 0.0
    %210 = vmatprep.subr.mxu0 0.0
    %211 = vmatpush1.msra.mxu0 0.0
    %212 = vmatprep.subr.mxu0 0.0
    %213 = vmatpush1.msra.mxu0 0.0
    %214 = vmatprep.subr.mxu0 0.0
    %215 = vmatpush1.msra.mxu0 0.0
    %216 = vmatprep.subr.mxu0 0.0
    %217 = vmatpush1.msra.mxu0 0.0
    %218 = vmatprep.subr.mxu0 0.0
    %219 = vmatpush1.msra.mxu0 %v23
    %220 = vmatprep.subr.mxu0 0.0
    %221 = vmatpush1.msra.mxu0 %v22
    %222 = vmatprep.subr.mxu0 0.0
    %223 = vmatpush2.msra.mxu0 0.0
    %224 = vmatprep.subr.mxu0 0.0
    %225 = vmatpush2.msra.mxu0 0.0
    %226 = vmatprep.subr.mxu0 0.0
    %227 = vmatpush2.msra.mxu0 0.0
    %228 = vmatprep.subr.mxu0 0.0
    %229 = vmatpush2.msra.mxu0 0.0
    %230 = vmatprep.subr.mxu0 0.0
    %231 = vmatpush2.msra.mxu0 0.0
    %232 = vmatprep.subr.mxu0 0.0
    %233 = vmatpush2.msra.mxu0 0.0
    %234 = vmatprep.subr.mxu0 0.0
    %235 = vmatpush2.msra.mxu0 0.0
    %236 = vmatprep.subr.mxu0 0.0
    %237 = vmatpush2.msra.mxu0 0.0
    %238 = vmatprep.subr.mxu0 0.0
    %239 = vmatpush2.msra.mxu0 0.0
    %240 = vmatprep.subr.mxu0 0.0
    %241 = vmatpush2.msra.mxu0 0.0
    %242 = vmatprep.subr.mxu0 0.0
    %243 = vmatpush2.msra.mxu0 0.0
    %244 = vmatprep.subr.mxu0 0.0
    %245 = vmatpush2.msra.mxu0 0.0
    %246 = vmatprep.subr.mxu0 0.0
    %247 = vmatpush2.msra.mxu0 0.0
    %248 = vmatprep.subr.mxu0 0.0
    %249 = vmatpush2.msra.mxu0 0.0
    %250 = vmatprep.subr.mxu0 0.0
    %251 = vmatpush2.msra.mxu0 0.0
    %252 = vmatprep.subr.mxu0 0.0
    %253 = vmatpush2.msra.mxu0 0.0
    %254 = vmatprep.mubr.f32.mxu0 0.0
    %255 = vmatmul.mubr.f32.gmra.mxu0 %v188
    %v256 = vpop.f32.mrf.mxu0
    %v257 = vadd.f32 %v186, %v256
    %v258 = vpop.f32.mrf.mxu0
    %259 = vdwg.mxu0
    %v260 = vtanh.pop %v257
    %v261 = vmax.f32 %v257, 0.0
    %v262 = vsub.f32 0.0, %v257
    %vm263 = vcmp.ne.f32.partialorder %v262, %v262
    %v264 = vadd.f32 %v257, 0.0
    %v265 = vand.u32 2147483647, %v262
    %v266 = vsub.f32 0.0, %v265
    %v267 = vmul.f32 %v266, 1.442695
    %v268 = vpow.pop %v267
    %v269 = vadd.f32 %v268, 1.0
    %v270 = vlog2.pop %v269
    %v271 = vmul.f32 %v270, 0.6931472
    %v272 = vmul.f32 -0.5, %v268
    %v273 = vadd.f32 %v272, 1.0
    %v274 = vmul.f32 %v273, %v268
    %v275 = vand.u32 2147483647, %v268
    %vm276 = vcmp.lt.f32.partialorder %v275, 0.0004427343
    %v277 = vsel %vm276, %v274, %v271
    %v278 = vadd.f32 %v261, %v277
    %v279 = vsel %vm263, %v264, %v278
    %v280 = vmul.f32 %v260, 2.0
    %v281 = vlog2.pop %v279
    %v282 = vmul.f32 %v281, 0.6931472
    %284 = vrot.lane.b32.xlu0 %v16, 4
    %v285 = vpop.permute.xlu0 %284
    %v287 = vmul.f32 %v279, %v285
    %289 = vrot.lane.b32.xlu0 %v287, 124
    %v290 = vpop.permute.xlu0 %289
    %v292 = vadd.f32 %v280, %v290
    %v293 = vmul.f32 %v16, -0.5
    %v294 = vmul.f32 %v293, %v16
    %296 = vrot.lane.b32.xlu0 %v282, 124
    %v297 = vpop.permute.xlu0 %296
    %v299 = vsub.f32 %v294, %v297
    %v300 = vsub.f32 %v299, 0.9189385
    %v301 = vadd.f32 %v282, 1.4189385
    %vm302 = vcmask 31744
    %303 = vst.msk [vmem:[#allocation2] sm:$0xff] %vm302, %v292
    %305 = vrot.lane.b32.xlu0 %v300, 4
    %v306 = vpop.permute.xlu0 %305
    %vm308 = vcmask 64544
    %309 = vst.msk [vmem:[#allocation2] sm:$0xff] %vm308, %v306
    %311 = vrot.lane.b32.xlu0 %v301, 4
    %v312 = vpop.permute.xlu0 %311
    %vm314 = vcmask 97344
    %315 = vst.msk [vmem:[#allocation2] sm:$0xff] %vm314, %v312
    // Predicated region
    $region14: #{tpu_custom_call.1} parent=1 // pred_check
      _
    $region15: #{tpu_custom_call.1} parent=1 // pred_check_branch
      %317 = sbr.rel (0) target = $region17
    $region16: #{tpu_custom_call.1} parent=1 // pred_region
      %s319 = ssub.s32 128, 128
      %320 = vsyncadd [#allocation3], %s319
      %s322 = sshll.u32 [#allocation2], 4
      %s323 = int_to_ptr.vmem [resolvable:$true] %s322
      %325 = dma.vmem_to_hbm [thread:$0]  %s323, 128, %s3, [#allocation3]
    $region17: #{tpu_custom_call.1} parent=1 // pred_fallthru
      _
    // Predicated region
    $region18: #{tpu_custom_call.1} parent=1 // pred_check
      _
    $region19: #{tpu_custom_call.1} parent=1 // pred_check_branch
      %327 = sbr.rel (0) target = $region21
    $region20: #{tpu_custom_call.1} parent=1 // pred_region
      %328 = dma.done [#allocation3], 128
    $region21: #{tpu_custom_call.1} parent=1 // pred_fallthru
      _
    %329 = vsyncpa [#allocation3], 1

</llo_original>
